<compile_context>
chip_gen: v7x
topology: tpu7x:2x2x1
jax: 0.10.0
libtpu: 0.0.40
codegen_flags: <defaults>
</compile_context>

<pallas_src>
import jax
import jax.numpy as jnp
from jax.experimental import pallas as pl
from jax.experimental.pallas import tpu as pltpu


def _fused_pointwise_conv_kernel(w1_ref, b1p_ref, w2b_ref, b2b_ref,
                                 keep_ref, x_ref, o_ref):
    """Fused 1x1-conv -> hsig -> 1x1-conv -> hsig (+border) on a lane-dense tile.

    w1_ref : (Cmid, Cin) VMEM      b1p_ref: (Cmid, 1) VMEM   (= b1 + 3)
    w2b_ref: (Cout, Cmid) VMEM     b2b_ref: (Cout, 1) VMEM   (= (b2 - 3) / 6)
    keep_ref: (1, TM)    VMEM      (0.0 on add_conv's zero-pad ring, else 1.0)
    x_ref  : (1, Cin, TM) VMEM     o_ref  : (1, Cout, TM) VMEM
    """
    x = x_ref[0]                     # (Cin, TM)
    w1 = w1_ref[...]                 # (Cmid, Cin)
    w2b = w2b_ref[...]               # (Cout, Cmid)
    keep = keep_ref[...]             # (1, TM)

    # --- sub_conv (1x1) as VPU broadcast-FMAs over dense (Cmid, TM) planes ---
    cin = x.shape[0]
    acc1 = w1[:, 0:1] * x[0:1, :]
    for c in range(1, cin):
        acc1 = acc1 + w1[:, c:c + 1] * x[c:c + 1, :]
    # 6 * v4 = clip(W1@x + b1 + 3, 0, 6); the /6 is folded into w2b.
    h6 = jnp.clip(acc1 + b1p_ref[...], 0.0, 6.0)          # (Cmid, TM)

    # --- add_conv (1x1) as VPU broadcast-FMAs -------------------------------
    cmid = h6.shape[0]
    acc2 = w2b[:, 0:1] * h6[0:1, :]
    for c in range(1, cmid):
        acc2 = acc2 + w2b[:, c:c + 1] * h6[c:c + 1, :]
    # keep==0 on the border ring -> value = clip(b2b, 0, 1) exactly (v4 pad = 0).
    o_ref[0] = jnp.clip(acc2 * keep + b2b_ref[...], 0.0, 1.0).astype(o_ref.dtype)


def _pick_tile(m2, target=1024):
    """Lane-tile size: full extent for small planes, else 1024 (dense, multiple
    of 128; intermediates stay small enough to avoid heavy vreg spilling)."""
    return m2 if m2 <= target else target


def fused_double_pointwise_conv(xs_flat, keep, w1, b1, w2, b2, tm):
    """xs_flat: (N, Cin, M2); keep: (1, M2). Returns final (N, Cout, M2)."""
    N, Cin, M2 = xs_flat.shape
    Cmid = w1.shape[0]
    Cout = w2.shape[0]

    # Constant-fold the two activation affines into the params (wrapper-side,
    # negligible cost; removes two full-plane mul/add pairs per tile).
    b1p = (b1 + 3.0).reshape(Cmid, 1)
    w2b = w2 * (1.0 / 36.0)
    b2b = ((b2 - 3.0) * (1.0 / 6.0)).reshape(Cout, 1)

    grid = (N, pl.cdiv(M2, tm))

    return pl.pallas_call(
        _fused_pointwise_conv_kernel,
        out_shape=jax.ShapeDtypeStruct((N, Cout, M2), xs_flat.dtype),
        grid=grid,
        in_specs=[
            pl.BlockSpec((Cmid, Cin), lambda n, m: (0, 0)),       # w1
            pl.BlockSpec((Cmid, 1), lambda n, m: (0, 0)),         # b1 + 3
            pl.BlockSpec((Cout, Cmid), lambda n, m: (0, 0)),      # w2 / 36
            pl.BlockSpec((Cout, 1), lambda n, m: (0, 0)),         # (b2 - 3) / 6
            pl.BlockSpec((1, tm), lambda n, m: (0, m)),           # keep mask
            pl.BlockSpec((1, Cin, tm), lambda n, m: (n, 0, m)),   # x tile
        ],
        out_specs=pl.BlockSpec((1, Cout, tm), lambda n, m: (n, 0, m)),
        compiler_params=pltpu.CompilerParams(
            dimension_semantics=("parallel", "parallel"),
        ),
    )(w1, b1p, w2b, b2b, keep, xs_flat)


def model_forward(x, w1, b1, w2, b2):
    """x: (N, 3, H, W) NCHW f32. w1: (8,3), w2: (8,8). Returns (N,8,H1+2,W1+2)."""
    N, C, H, W = x.shape
    Cout = w2.shape[0]

    # Geometry: sub_conv (k=1, s=2, p=1) -> (H1, W1); add_conv (k=1, s=1, p=1)
    # -> (H2, W2) = (H1+2, W1+2).
    H1 = (H + 1) // 2 + 1
    W1 = (W + 1) // 2 + 1
    H2, W2 = H1 + 2, W1 + 2
    M2 = H2 * W2

    # Fold BOTH the sub_conv sampling (pad=1, stride=2) and the add_conv pad=1
    # shift into one pad + strided slice of the raw input:
    #   xs_shift[:, :, h, w] = x[:, :, 2h-3, 2w-3]   (zero where out of range)
    # Interior output (h, w) of add_conv needs exactly this pixel; border rows/
    # cols are overridden in-kernel via the keep mask.
    ph = 2 * H2 - H - 4          # bottom pad so padded height == 2*H2 - 1
    pw = 2 * W2 - W - 4
    xs_shift = jnp.pad(x, ((0, 0), (0, 0), (3, ph), (3, pw)))[:, :, ::2, ::2]
    xs_flat = xs_shift.reshape(N, C, M2)     # free reshape (contiguous)

    # keep mask over the flattened (H2, W2) plane: 0 on the outer ring, 1 inside.
    row = jnp.arange(H2)
    col = jnp.arange(W2)
    keep2d = ((row[:, None] > 0) & (row[:, None] < H2 - 1) &
              (col[None, :] > 0) & (col[None, :] < W2 - 1)).astype(x.dtype)
    keep = keep2d.reshape(1, M2)

    tm = _pick_tile(M2)
    out_flat = fused_double_pointwise_conv(xs_flat, keep, w1, b1, w2, b2, tm)
    # Final reshape is metadata-only: the kernel already wrote the full output,
    # border included -> no epilogue HBM passes.
    return out_flat.reshape(N, Cout, H2, W2)


def ref_forward(x, w1, b1, w2, b2):
    """Pure-JAX reference with identical semantics (full f32 contractions)."""
    hp = jax.lax.Precision.HIGHEST
    xp = jnp.pad(x, ((0, 0), (0, 0), (1, 1), (1, 1)))
    xs = xp[:, :, ::2, ::2]
    v1 = jnp.einsum('oc,nchw->nohw', w1, xs, precision=hp) + b1[None, :, None, None]
    v4 = jnp.clip(v1 + 3.0, 0.0, 6.0) / 6.0
    v4p = jnp.pad(v4, ((0, 0), (0, 0), (1, 1), (1, 1)))
    v5 = jnp.einsum('oc,nchw->nohw', w2, v4p, precision=hp) + b2[None, :, None, None]
    return jnp.clip(v5 - 3.0, 0.0, 6.0) / 6.0


if __name__ == "__main__":
    key = jax.random.PRNGKey(0)
    k_x, k_w1, k_b1, k_w2, k_b2 = jax.random.split(key, 5)

    # PyTorch conv weights (out, in, 1, 1) -> stored here as (out, in).
    w1 = jax.random.normal(k_w1, (8, 3), dtype=jnp.float32)
    b1 = jax.random.normal(k_b1, (8,), dtype=jnp.float32) * 0.5
    w2 = jax.random.normal(k_w2, (8, 8), dtype=jnp.float32) * 2.0
    b2 = jax.random.normal(k_b2, (8,), dtype=jnp.float32) * 0.5

    fwd = jax.jit(model_forward)

    # Small smoke test + the spec shape (1, 3, 128, 128): the latter exercises
    # the multi-tile grid (1, 5) and the ragged last lane tile (4489 % 1024).
    for (N, Cin, H, W) in [(2, 3, 16, 16), (1, 3, 128, 128)]:
        kx = jax.random.fold_in(k_x, H)
        x = jax.random.normal(kx, (N, Cin, H, W), dtype=jnp.float32)

        out = jax.block_until_ready(fwd(x, w1, b1, w2, b2))

        H1 = (H + 1) // 2 + 1
        W1 = (W + 1) // 2 + 1
        assert out.shape == (N, 8, H1 + 2, W1 + 2), out.shape

        ref = ref_forward(x, w1, b1, w2, b2)
        max_err = float(jnp.max(jnp.abs(out - ref)))
        assert max_err < 1e-5, f"max_err={max_err} at shape {(N, Cin, H, W)}"

    print("KERNEL_OK")
</pallas_src>

<mosaic_0001>
module attributes {stable_mosaic.version = 11 : i64} {
  func.func @_fused_pointwise_conv_kernel(%arg0: i32, %arg1: i32, %arg2: memref<8x3xf32, #tpu.memory_space<vmem>>, %arg3: memref<8x1xf32, #tpu.memory_space<vmem>>, %arg4: memref<8x8xf32, #tpu.memory_space<vmem>>, %arg5: memref<8x1xf32, #tpu.memory_space<vmem>>, %arg6: memref<1x121xf32, #tpu.memory_space<vmem>>, %arg7: memref<1x3x121xf32, #tpu.memory_space<vmem>>, %arg8: memref<1x8x121xf32, #tpu.memory_space<vmem>>) attributes {dimension_semantics = [#tpu.dimension_semantics<parallel>, #tpu.dimension_semantics<parallel>], iteration_bounds = array<i64: 2, 1>, scalar_prefetch = 0 : i64, scratch_operands = 0 : i64, tpu.core_type = #tpu.core_type<tc>, window_params = [{pipeline_mode = #tpu.pipeline_mode<synchronous>, transform_indices = @transform_0, window_bounds = array<i64: 8, 3>}, {pipeline_mode = #tpu.pipeline_mode<synchronous>, transform_indices = @transform_1, window_bounds = array<i64: 8, 1>}, {pipeline_mode = #tpu.pipeline_mode<synchronous>, transform_indices = @transform_2, window_bounds = array<i64: 8, 8>}, {pipeline_mode = #tpu.pipeline_mode<synchronous>, transform_indices = @transform_3, window_bounds = array<i64: 8, 1>}, {transform_indices = @transform_4, window_bounds = array<i64: 1, 121>}, {transform_indices = @transform_5, window_bounds = array<i64: 1, 3, 121>}, {transform_indices = @transform_6, window_bounds = array<i64: 1, 8, 121>}]} {
    %c0 = arith.constant 0 : index
    %c0_0 = arith.constant 0 : index
    %c0_1 = arith.constant 0 : index
    %0 = vector.load %arg7[%c0, %c0_0, %c0_1] : memref<1x3x121xf32, #tpu.memory_space<vmem>>, vector<1x3x121xf32>
    %1 = vector.shape_cast %0 : vector<1x3x121xf32> to vector<3x121xf32>
    %c0_2 = arith.constant 0 : index
    %c0_3 = arith.constant 0 : index
    %2 = vector.load %arg2[%c0_2, %c0_3] : memref<8x3xf32, #tpu.memory_space<vmem>>, vector<8x3xf32>
    %c0_4 = arith.constant 0 : index
    %c0_5 = arith.constant 0 : index
    %3 = vector.load %arg4[%c0_4, %c0_5] : memref<8x8xf32, #tpu.memory_space<vmem>>, vector<8x8xf32>
    %c0_6 = arith.constant 0 : index
    %c0_7 = arith.constant 0 : index
    %4 = vector.load %arg6[%c0_6, %c0_7] : memref<1x121xf32, #tpu.memory_space<vmem>>, vector<1x121xf32>
    %5 = vector.extract_strided_slice %2 {offsets = [0, 0], sizes = [8, 1], strides = [1, 1]} : vector<8x3xf32> to vector<8x1xf32>
    %6 = vector.extract_strided_slice %1 {offsets = [0, 0], sizes = [1, 121], strides = [1, 1]} : vector<3x121xf32> to vector<1x121xf32>
    %7 = vector.broadcast %5 : vector<8x1xf32> to vector<8x121xf32>
    %8 = vector.broadcast %6 : vector<1x121xf32> to vector<8x121xf32>
    %9 = arith.mulf %7, %8 : vector<8x121xf32>
    %10 = vector.extract_strided_slice %2 {offsets = [0, 1], sizes = [8, 1], strides = [1, 1]} : vector<8x3xf32> to vector<8x1xf32>
    %11 = vector.extract_strided_slice %1 {offsets = [1, 0], sizes = [1, 121], strides = [1, 1]} : vector<3x121xf32> to vector<1x121xf32>
    %12 = vector.broadcast %10 : vector<8x1xf32> to vector<8x121xf32>
    %13 = vector.broadcast %11 : vector<1x121xf32> to vector<8x121xf32>
    %14 = arith.mulf %12, %13 : vector<8x121xf32>
    %15 = arith.addf %9, %14 : vector<8x121xf32>
    %16 = vector.extract_strided_slice %2 {offsets = [0, 2], sizes = [8, 1], strides = [1, 1]} : vector<8x3xf32> to vector<8x1xf32>
    %17 = vector.extract_strided_slice %1 {offsets = [2, 0], sizes = [1, 121], strides = [1, 1]} : vector<3x121xf32> to vector<1x121xf32>
    %18 = vector.broadcast %16 : vector<8x1xf32> to vector<8x121xf32>
    %19 = vector.broadcast %17 : vector<1x121xf32> to vector<8x121xf32>
    %20 = arith.mulf %18, %19 : vector<8x121xf32>
    %21 = arith.addf %15, %20 : vector<8x121xf32>
    %c0_8 = arith.constant 0 : index
    %c0_9 = arith.constant 0 : index
    %22 = vector.load %arg3[%c0_8, %c0_9] : memref<8x1xf32, #tpu.memory_space<vmem>>, vector<8x1xf32>
    %23 = vector.broadcast %22 : vector<8x1xf32> to vector<8x121xf32>
    %24 = arith.addf %21, %23 : vector<8x121xf32>
    %cst = arith.constant 0.000000e+00 : f32
    %cst_10 = arith.constant 6.000000e+00 : f32
    %25 = vector.broadcast %cst : f32 to vector<8x121xf32>
    %26 = arith.maximumf %25, %24 : vector<8x121xf32>
    %27 = vector.broadcast %cst_10 : f32 to vector<8x121xf32>
    %28 = arith.minimumf %27, %26 : vector<8x121xf32>
    %29 = vector.extract_strided_slice %3 {offsets = [0, 0], sizes = [8, 1], strides = [1, 1]} : vector<8x8xf32> to vector<8x1xf32>
    %30 = vector.extract_strided_slice %28 {offsets = [0, 0], sizes = [1, 121], strides = [1, 1]} : vector<8x121xf32> to vector<1x121xf32>
    %31 = vector.broadcast %29 : vector<8x1xf32> to vector<8x121xf32>
    %32 = vector.broadcast %30 : vector<1x121xf32> to vector<8x121xf32>
    %33 = arith.mulf %31, %32 : vector<8x121xf32>
    %34 = vector.extract_strided_slice %3 {offsets = [0, 1], sizes = [8, 1], strides = [1, 1]} : vector<8x8xf32> to vector<8x1xf32>
    %35 = vector.extract_strided_slice %28 {offsets = [1, 0], sizes = [1, 121], strides = [1, 1]} : vector<8x121xf32> to vector<1x121xf32>
    %36 = vector.broadcast %34 : vector<8x1xf32> to vector<8x121xf32>
    %37 = vector.broadcast %35 : vector<1x121xf32> to vector<8x121xf32>
    %38 = arith.mulf %36, %37 : vector<8x121xf32>
    %39 = arith.addf %33, %38 : vector<8x121xf32>
    %40 = vector.extract_strided_slice %3 {offsets = [0, 2], sizes = [8, 1], strides = [1, 1]} : vector<8x8xf32> to vector<8x1xf32>
    %41 = vector.extract_strided_slice %28 {offsets = [2, 0], sizes = [1, 121], strides = [1, 1]} : vector<8x121xf32> to vector<1x121xf32>
    %42 = vector.broadcast %40 : vector<8x1xf32> to vector<8x121xf32>
    %43 = vector.broadcast %41 : vector<1x121xf32> to vector<8x121xf32>
    %44 = arith.mulf %42, %43 : vector<8x121xf32>
    %45 = arith.addf %39, %44 : vector<8x121xf32>
    %46 = vector.extract_strided_slice %3 {offsets = [0, 3], sizes = [8, 1], strides = [1, 1]} : vector<8x8xf32> to vector<8x1xf32>
    %47 = vector.extract_strided_slice %28 {offsets = [3, 0], sizes = [1, 121], strides = [1, 1]} : vector<8x121xf32> to vector<1x121xf32>
    %48 = vector.broadcast %46 : vector<8x1xf32> to vector<8x121xf32>
    %49 = vector.broadcast %47 : vector<1x121xf32> to vector<8x121xf32>
    %50 = arith.mulf %48, %49 : vector<8x121xf32>
    %51 = arith.addf %45, %50 : vector<8x121xf32>
    %52 = vector.extract_strided_slice %3 {offsets = [0, 4], sizes = [8, 1], strides = [1, 1]} : vector<8x8xf32> to vector<8x1xf32>
    %53 = vector.extract_strided_slice %28 {offsets = [4, 0], sizes = [1, 121], strides = [1, 1]} : vector<8x121xf32> to vector<1x121xf32>
    %54 = vector.broadcast %52 : vector<8x1xf32> to vector<8x121xf32>
    %55 = vector.broadcast %53 : vector<1x121xf32> to vector<8x121xf32>
    %56 = arith.mulf %54, %55 : vector<8x121xf32>
    %57 = arith.addf %51, %56 : vector<8x121xf32>
    %58 = vector.extract_strided_slice %3 {offsets = [0, 5], sizes = [8, 1], strides = [1, 1]} : vector<8x8xf32> to vector<8x1xf32>
    %59 = vector.extract_strided_slice %28 {offsets = [5, 0], sizes = [1, 121], strides = [1, 1]} : vector<8x121xf32> to vector<1x121xf32>
    %60 = vector.broadcast %58 : vector<8x1xf32> to vector<8x121xf32>
    %61 = vector.broadcast %59 : vector<1x121xf32> to vector<8x121xf32>
    %62 = arith.mulf %60, %61 : vector<8x121xf32>
    %63 = arith.addf %57, %62 : vector<8x121xf32>
    %64 = vector.extract_strided_slice %3 {offsets = [0, 6], sizes = [8, 1], strides = [1, 1]} : vector<8x8xf32> to vector<8x1xf32>
    %65 = vector.extract_strided_slice %28 {offsets = [6, 0], sizes = [1, 121], strides = [1, 1]} : vector<8x121xf32> to vector<1x121xf32>
    %66 = vector.broadcast %64 : vector<8x1xf32> to vector<8x121xf32>
    %67 = vector.broadcast %65 : vector<1x121xf32> to vector<8x121xf32>
    %68 = arith.mulf %66, %67 : vector<8x121xf32>
    %69 = arith.addf %63, %68 : vector<8x121xf32>
    %70 = vector.extract_strided_slice %3 {offsets = [0, 7], sizes = [8, 1], strides = [1, 1]} : vector<8x8xf32> to vector<8x1xf32>
    %71 = vector.extract_strided_slice %28 {offsets = [7, 0], sizes = [1, 121], strides = [1, 1]} : vector<8x121xf32> to vector<1x121xf32>
    %72 = vector.broadcast %70 : vector<8x1xf32> to vector<8x121xf32>
    %73 = vector.broadcast %71 : vector<1x121xf32> to vector<8x121xf32>
    %74 = arith.mulf %72, %73 : vector<8x121xf32>
    %75 = arith.addf %69, %74 : vector<8x121xf32>
    %76 = vector.broadcast %4 : vector<1x121xf32> to vector<8x121xf32>
    %77 = arith.mulf %75, %76 : vector<8x121xf32>
    %c0_11 = arith.constant 0 : index
    %c0_12 = arith.constant 0 : index
    %78 = vector.load %arg5[%c0_11, %c0_12] : memref<8x1xf32, #tpu.memory_space<vmem>>, vector<8x1xf32>
    %79 = vector.broadcast %78 : vector<8x1xf32> to vector<8x121xf32>
    %80 = arith.addf %77, %79 : vector<8x121xf32>
    %cst_13 = arith.constant 0.000000e+00 : f32
    %cst_14 = arith.constant 1.000000e+00 : f32
    %81 = vector.broadcast %cst_13 : f32 to vector<8x121xf32>
    %82 = arith.maximumf %81, %80 : vector<8x121xf32>
    %83 = vector.broadcast %cst_14 : f32 to vector<8x121xf32>
    %84 = arith.minimumf %83, %82 : vector<8x121xf32>
    %c0_15 = arith.constant 0 : index
    %c0_16 = arith.constant 0 : index
    %c0_17 = arith.constant 0 : index
    %85 = vector.load %arg8[%c0_15, %c0_16, %c0_17] : memref<1x8x121xf32, #tpu.memory_space<vmem>>, vector<1x8x121xf32>
    %86 = vector.shape_cast %85 : vector<1x8x121xf32> to vector<8x121xf32>
    %87 = vector.shape_cast %84 : vector<8x121xf32> to vector<1x8x121xf32>
    tpu.vector_store %arg8[%c0_15, %c0_16, %c0_17], %87 {strides = array<i32>} : memref<1x8x121xf32, #tpu.memory_space<vmem>>, vector<1x8x121xf32>,
    return
  }
  func.func @transform_0(%arg0: i32, %arg1: i32) -> (i32, i32) {
    %c0_i32 = arith.constant 0 : i32
    %c0_i32_0 = arith.constant 0 : i32
    %c0_i32_1 = arith.constant 0 : i32
    return %c0_i32, %c0_i32_0 : i32, i32
  }
  func.func @transform_1(%arg0: i32, %arg1: i32) -> (i32, i32) {
    %c0_i32 = arith.constant 0 : i32
    %c0_i32_0 = arith.constant 0 : i32
    %c0_i32_1 = arith.constant 0 : i32
    return %c0_i32, %c0_i32_0 : i32, i32
  }
  func.func @transform_2(%arg0: i32, %arg1: i32) -> (i32, i32) {
    %c0_i32 = arith.constant 0 : i32
    %c0_i32_0 = arith.constant 0 : i32
    %c0_i32_1 = arith.constant 0 : i32
    return %c0_i32, %c0_i32_0 : i32, i32
  }
  func.func @transform_3(%arg0: i32, %arg1: i32) -> (i32, i32) {
    %c0_i32 = arith.constant 0 : i32
    %c0_i32_0 = arith.constant 0 : i32
    %c0_i32_1 = arith.constant 0 : i32
    return %c0_i32, %c0_i32_0 : i32, i32
  }
  func.func @transform_4(%arg0: i32, %arg1: i32) -> (i32, i32) {
    %c0_i32 = arith.constant 0 : i32
    %c0_i32_0 = arith.constant 0 : i32
    return %c0_i32, %arg1 : i32, i32
  }
  func.func @transform_5(%arg0: i32, %arg1: i32) -> (i32, i32, i32) {
    %c0_i32 = arith.constant 0 : i32
    %c0_i32_0 = arith.constant 0 : i32
    return %arg0, %c0_i32, %arg1 : i32, i32, i32
  }
  func.func @transform_6(%arg0: i32, %arg1: i32) -> (i32, i32, i32) {
    %c0_i32 = arith.constant 0 : i32
    %c0_i32_0 = arith.constant 0 : i32
    return %arg0, %c0_i32, %arg1 : i32, i32, i32
  }
}

</mosaic_0001>

<llo_original>
// kernel: model_forward.1
$region0: #{model_forward.1}
  #allocation0 [shape = 'u32[]', space=smem, size = 0x4, offset = 0x4, fixed_abs, tag = 'smem constant byte address 0x4 - core index']
  #allocation1 [shape = 'u32[144,128]{1,0:T(1,128)}', space=vmem, size = 0x12000, scoped, tag = 'internal scratch']
  %s0 = inlined_call_operand.vmem [shape: f32[8,3], index: 0, kind: input, shape index: {}]
  %s1 = inlined_call_operand.vmem [shape: f32[8,1], index: 1, kind: input, shape index: {}]
  %s2 = inlined_call_operand.vmem [shape: f32[8,8], index: 2, kind: input, shape index: {}]
  %s3 = inlined_call_operand.vmem [shape: f32[8,1], index: 3, kind: input, shape index: {}]
  %s4 = inlined_call_operand.vmem [shape: f32[1,121], index: 4, kind: input, shape index: {}]
  %s5 = inlined_call_operand.vmem [shape: f32[2,3,121], index: 5, kind: input, shape index: {}]
  %s6 = inlined_call_operand.vmem [shape: f32[2,8,121], index: 6, kind: output, shape index: {}]
  %s7 = sld [smem:[#allocation0]]
  $region57: #{model_forward.1} parent=0
    _
  %s9 = ssub.s32 1, %s7
  %s10 = scalar_select 0, %s9, %s7
  loop: start=0, step=1, limit=4
  $region2: #{model_forward.1} parent=0 // loop_pre_header
    _
  $region3: #{model_forward.1} parent=0 // loop_header
    %s12 = sphi 0, %s16
    %p13 = scmp.ge.s32.totalorder %s12, 4
    %s19 = sphi 0, %s31
    %s20 = sphi 0, %s27
    %s21 = sphi 0, %s19
    %s22 = sphi 0, %s20
    %s23 = sphi 0, %s21
    %s24 = sphi 0, %s22
    %s32 = sphi 0, %s32
    %s34 = sphi 0, %s32
    %s35 = sphi 0, %s34
    %s49 = sphi 0, %s35
    %s53 = sphi 0, %s53
    %s55 = sphi 0, %s53
    %s56 = sphi 0, %s55
    %s70 = sphi 0, %s56
    %s74 = sphi 0, %s74
    %s76 = sphi 0, %s74
    %s77 = sphi 0, %s76
    %s91 = sphi 0, %s77
    %s95 = sphi 0, %s95
    %s97 = sphi 0, %s95
    %s98 = sphi 0, %s97
    %s112 = sphi 0, %s98
    %s118 = sphi 0, %s120
    %s121 = sphi 0, %s118
    %s122 = sphi 0, %s121
    %s138 = sphi 0, %s122
    %s146 = sphi 0, %s148
    %s149 = sphi 0, %s146
    %s150 = sphi 0, %s149
    %s166 = sphi 0, %s150
    %s174 = sphi 0, %s176
    %s177 = sphi 0, %s174
    %s178 = sphi 0, %s177
    %s194 = sphi 0, %s178
  $region4: #{model_forward.1} parent=0 // loop_header_branch
    %15 = sbr.rel (%p13) target = $region8
  $region5: #{model_forward.1} parent=0 // loop_body
    %s17 = ssub.s32 %s12, 1
    %s18 = ssub.s32 %s12, 2
    %s25 = sadd.s32 1, %s20
    %p26 = scmp.ge.s32.totalorder %s25, 1
    %s27 = scalar_select %p26, 0, %s25
    %s28 = sadd.s32 1, %s19
    %s29 = scalar_select %p26, %s28, %s19
    %p30 = scmp.ge.s32.totalorder %s29, 2
    %s31 = scalar_select %p30, 0, %s29
    %s33 = sadd.s32 %s32, 1
    %p36 = scmp.eq.s32.totalorder %s12, 1
    %p37 = scmp.ne.s32.totalorder %s32, %s34
    %p38 = scmp.eq.s32.totalorder %s12, 0
    %p39 = por %p37, %p38
    %p40 = scmp.ne.s32.totalorder %s32, %s34
    %p41 = scmp.eq.s32.totalorder %s17, 1
    %p42 = por %p40, %p41
    %p43 = scmp.ne.s32.totalorder %s34, %s35
    %p44 = scmp.eq.s32.totalorder %s17, 0
    %p45 = por %p43, %p44
    %p46 = scmp.ne.s32.totalorder %s34, %s35
    %p47 = scmp.eq.s32.totalorder %s18, 1
    %p48 = por %p46, %p47
    %p50 = scmp.ne.s32.totalorder %s35, %s49
    %p51 = scmp.eq.s32.totalorder %s18, 0
    %p52 = por %p50, %p51
    %s54 = sadd.s32 %s53, 1
    %p57 = scmp.eq.s32.totalorder %s12, 1
    %p58 = scmp.ne.s32.totalorder %s53, %s55
    %p59 = scmp.eq.s32.totalorder %s12, 0
    %p60 = por %p58, %p59
    %p61 = scmp.ne.s32.totalorder %s53, %s55
    %p62 = scmp.eq.s32.totalorder %s17, 1
    %p63 = por %p61, %p62
    %p64 = scmp.ne.s32.totalorder %s55, %s56
    %p65 = scmp.eq.s32.totalorder %s17, 0
    %p66 = por %p64, %p65
    %p67 = scmp.ne.s32.totalorder %s55, %s56
    %p68 = scmp.eq.s32.totalorder %s18, 1
    %p69 = por %p67, %p68
    %p71 = scmp.ne.s32.totalorder %s56, %s70
    %p72 = scmp.eq.s32.totalorder %s18, 0
    %p73 = por %p71, %p72
    %s75 = sadd.s32 %s74, 1
    %p78 = scmp.eq.s32.totalorder %s12, 1
    %p79 = scmp.ne.s32.totalorder %s74, %s76
    %p80 = scmp.eq.s32.totalorder %s12, 0
    %p81 = por %p79, %p80
    %p82 = scmp.ne.s32.totalorder %s74, %s76
    %p83 = scmp.eq.s32.totalorder %s17, 1
    %p84 = por %p82, %p83
    %p85 = scmp.ne.s32.totalorder %s76, %s77
    %p86 = scmp.eq.s32.totalorder %s17, 0
    %p87 = por %p85, %p86
    %p88 = scmp.ne.s32.totalorder %s76, %s77
    %p89 = scmp.eq.s32.totalorder %s18, 1
    %p90 = por %p88, %p89
    %p92 = scmp.ne.s32.totalorder %s77, %s91
    %p93 = scmp.eq.s32.totalorder %s18, 0
    %p94 = por %p92, %p93
    %s96 = sadd.s32 %s95, 1
    %p99 = scmp.eq.s32.totalorder %s12, 1
    %p100 = scmp.ne.s32.totalorder %s95, %s97
    %p101 = scmp.eq.s32.totalorder %s12, 0
    %p102 = por %p100, %p101
    %p103 = scmp.ne.s32.totalorder %s95, %s97
    %p104 = scmp.eq.s32.totalorder %s17, 1
    %p105 = por %p103, %p104
    %p106 = scmp.ne.s32.totalorder %s97, %s98
    %p107 = scmp.eq.s32.totalorder %s17, 0
    %p108 = por %p106, %p107
    %p109 = scmp.ne.s32.totalorder %s97, %s98
    %p110 = scmp.eq.s32.totalorder %s18, 1
    %p111 = por %p109, %p110
    %p113 = scmp.ne.s32.totalorder %s98, %s112
    %p114 = scmp.eq.s32.totalorder %s18, 0
    %p115 = por %p113, %p114
    %s116 = ssub.s32 %s20, %s27
    %p117 = scmp.eq.s32.totalorder %s116, 0
    %s119 = sadd.s32 %s118, 1
    %s120 = scalar_select %p117, %s118, %s119
    %p123 = pneg %p117
    %p124 = scmp.eq.s32.totalorder %s12, 1
    %p125 = por %p123, %p124
    %p126 = scmp.ne.s32.totalorder %s118, %s121
    %p127 = scmp.eq.s32.totalorder %s12, 0
    %p128 = por %p126, %p127
    %p129 = scmp.ne.s32.totalorder %s118, %s121
    %p130 = scmp.eq.s32.totalorder %s17, 1
    %p131 = por %p129, %p130
    %p132 = scmp.ne.s32.totalorder %s121, %s122
    %p133 = scmp.eq.s32.totalorder %s17, 0
    %p134 = por %p132, %p133
    %p135 = scmp.ne.s32.totalorder %s121, %s122
    %p136 = scmp.eq.s32.totalorder %s18, 1
    %p137 = por %p135, %p136
    %p139 = scmp.ne.s32.totalorder %s122, %s138
    %p140 = scmp.eq.s32.totalorder %s18, 0
    %p141 = por %p139, %p140
    %s142 = ssub.s32 %s19, %s31
    %s143 = ssub.s32 %s20, %s27
    %s144 = sor.u32 %s142, %s143
    %p145 = scmp.eq.s32.totalorder %s144, 0
    %s147 = sadd.s32 %s146, 1
    %s148 = scalar_select %p145, %s146, %s147
    %p151 = pneg %p145
    %p152 = scmp.eq.s32.totalorder %s12, 1
    %p153 = por %p151, %p152
    %p154 = scmp.ne.s32.totalorder %s146, %s149
    %p155 = scmp.eq.s32.totalorder %s12, 0
    %p156 = por %p154, %p155
    %p157 = scmp.ne.s32.totalorder %s146, %s149
    %p158 = scmp.eq.s32.totalorder %s17, 1
    %p159 = por %p157, %p158
    %p160 = scmp.ne.s32.totalorder %s149, %s150
    %p161 = scmp.eq.s32.totalorder %s17, 0
    %p162 = por %p160, %p161
    %p163 = scmp.ne.s32.totalorder %s149, %s150
    %p164 = scmp.eq.s32.totalorder %s18, 1
    %p165 = por %p163, %p164
    %p167 = scmp.ne.s32.totalorder %s150, %s166
    %p168 = scmp.eq.s32.totalorder %s18, 0
    %p169 = por %p167, %p168
    %s170 = ssub.s32 %s19, %s31
    %s171 = ssub.s32 %s20, %s27
    %s172 = sor.u32 %s170, %s171
    %p173 = scmp.eq.s32.totalorder %s172, 0
    %s175 = sadd.s32 %s174, 1
    %s176 = scalar_select %p173, %s174, %s175
    %p179 = pneg %p173
    %p180 = scmp.eq.s32.totalorder %s12, 1
    %p181 = por %p179, %p180
    %p182 = scmp.ne.s32.totalorder %s174, %s177
    %p183 = scmp.eq.s32.totalorder %s12, 0
    %p184 = por %p182, %p183
    %p185 = scmp.ne.s32.totalorder %s174, %s177
    %p186 = scmp.eq.s32.totalorder %s17, 1
    %p187 = por %p185, %p186
    %p188 = scmp.ne.s32.totalorder %s177, %s178
    %p189 = scmp.eq.s32.totalorder %s17, 0
    %p190 = por %p188, %p189
    %p191 = scmp.ne.s32.totalorder %s177, %s178
    %p192 = scmp.eq.s32.totalorder %s18, 1
    %p193 = por %p191, %p192
    %p195 = scmp.ne.s32.totalorder %s178, %s194
    %p196 = scmp.eq.s32.totalorder %s18, 0
    %p197 = por %p195, %p196
    %p198 = scmp.le.s32.totalorder 1, %s12
    %p199 = scmp.lt.s32.totalorder %s12, 3
    %p200 = pnand %p198, %p199
    %p201 = pneg %p200
    // Predicated region
    $region9: #{model_forward.1} parent=5 // pred_check
      _
    $region10: #{model_forward.1} parent=5 // pred_check_branch
      %203 = sbr.rel (%p200) target = $region12
    $region11: #{model_forward.1} parent=5 // pred_region
      %s204 = ssub.s32 %s12, 1
      // Predicated region
      $region13: #{model_forward.1} parent=11 // pred_check
        %p205 = pneg %p45
      $region14: #{model_forward.1} parent=11 // pred_check_branch
        %207 = sbr.rel (%p205) target = $region16
      $region15: #{model_forward.1} parent=11 // pred_region
        _
      $region16: #{model_forward.1} parent=11 // pred_fallthru
        _
      // Predicated region
      $region17: #{model_forward.1} parent=11 // pred_check
        %p208 = pneg %p66
      $region18: #{model_forward.1} parent=11 // pred_check_branch
        %210 = sbr.rel (%p208) target = $region20
      $region19: #{model_forward.1} parent=11 // pred_region
        _
      $region20: #{model_forward.1} parent=11 // pred_fallthru
        _
      // Predicated region
      $region21: #{model_forward.1} parent=11 // pred_check
        %p211 = pneg %p87
      $region22: #{model_forward.1} parent=11 // pred_check_branch
        %213 = sbr.rel (%p211) target = $region24
      $region23: #{model_forward.1} parent=11 // pred_region
        _
      $region24: #{model_forward.1} parent=11 // pred_fallthru
        _
      // Predicated region
      $region25: #{model_forward.1} parent=11 // pred_check
        %p214 = pneg %p108
      $region26: #{model_forward.1} parent=11 // pred_check_branch
        %216 = sbr.rel (%p214) target = $region28
      $region27: #{model_forward.1} parent=11 // pred_region
        _
      $region28: #{model_forward.1} parent=11 // pred_fallthru
        _
      // Predicated region
      $region29: #{model_forward.1} parent=11 // pred_check
        %p217 = pneg %p134
      $region30: #{model_forward.1} parent=11 // pred_check_branch
        %219 = sbr.rel (%p217) target = $region32
      $region31: #{model_forward.1} parent=11 // pred_region
        %p220 = scmp.lt.s32.totalorder %s22, 0
        %s221 = scalar_select %p220, %s22, 0
        %s222 = scalar_lea.vmem %s4, %s221
      $region32: #{model_forward.1} parent=11 // pred_fallthru
        _
    $region12: #{model_forward.1} parent=5 // pred_fallthru
      _
    %p223 = scmp.lt.s32.totalorder %s12, 2
    // Predicated region
    $region33: #{model_forward.1} parent=5 // pred_check
      %p224 = pneg %p223
    $region34: #{model_forward.1} parent=5 // pred_check_branch
      %226 = sbr.rel (%p224) target = $region36
    $region35: #{model_forward.1} parent=5 // pred_region
      // Predicated region
      $region37: #{model_forward.1} parent=35 // pred_check
        %p227 = pneg %p156
      $region38: #{model_forward.1} parent=35 // pred_check_branch
        %229 = sbr.rel (%p227) target = $region40
      $region39: #{model_forward.1} parent=35 // pred_region
        %p230 = scmp.lt.s32.totalorder %s19, 1
        %s231 = scalar_select %p230, %s19, 1
        %p232 = scmp.lt.s32.totalorder %s20, 0
        %s233 = scalar_select %p232, %s20, 0
        %s234 = sadd.s32 %s233, %s231
        %s235 = smul.addr %s234, 4
        %s236 = scalar_lea.vmem %s5, %s235
      $region40: #{model_forward.1} parent=35 // pred_fallthru
        _
    $region36: #{model_forward.1} parent=5 // pred_fallthru
      _
    %p237 = scmp.le.s32.totalorder 1, %s12
    %p238 = scmp.lt.s32.totalorder %s12, 3
    %p239 = pnand %p237, %p238
    %p240 = pneg %p239
    // Predicated region
    $region41: #{model_forward.1} parent=5 // pred_check
      _
    $region42: #{model_forward.1} parent=5 // pred_check_branch
      %242 = sbr.rel (%p239) target = $region44
    $region43: #{model_forward.1} parent=5 // pred_region
      %s243 = ssub.s32 %s12, 1
      %p244 = pneg %p45
      %p245 = pneg %p42
      %p246 = pneg %p66
      %p247 = pneg %p63
      %p248 = pneg %p87
      %p249 = pneg %p84
      %p250 = pneg %p108
      %p251 = pneg %p105
      %p252 = scmp.lt.s32.totalorder %s22, 0
      %s253 = scalar_select %p252, %s22, 0
      %s254 = scalar_lea.vmem %s4, %s253
      %p255 = pneg %p134
      %p256 = pneg %p131
      %p257 = scmp.lt.s32.totalorder %s21, 1
      %s258 = scalar_select %p257, %s21, 1
      %p259 = scmp.lt.s32.totalorder %s22, 0
      %s260 = scalar_select %p259, %s22, 0
      %s261 = sadd.s32 %s260, %s258
      %s262 = smul.addr %s261, 4
      %s263 = scalar_lea.vmem %s5, %s262
      %p264 = pneg %p162
      %p265 = pneg %p159
      %p266 = pneg %p190
      %p267 = pneg %p187
      %p268 = scmp.lt.s32.totalorder %s21, 1
      %s269 = scalar_select %p268, %s21, 1
      %p270 = scmp.lt.s32.totalorder %s22, 0
      %s271 = scalar_select %p270, %s22, 0
      %s272 = sadd.s32 %s271, %s269
      %s273 = smul.addr %s272, 8
      %s274 = scalar_lea.vmem %s6, %s273
      %p275 = scmp.lt.s32.totalorder %s22, 0
      %s276 = scalar_select %p275, %s22, 0
      %s277 = scalar_lea.vmem %s4, %s276
      %p278 = scmp.lt.s32.totalorder %s21, 1
      %s279 = scalar_select %p278, %s21, 1
      %p280 = scmp.lt.s32.totalorder %s22, 0
      %s281 = scalar_select %p280, %s22, 0
      %s282 = sadd.s32 %s281, %s279
      %s283 = smul.addr %s282, 4
      %s284 = scalar_lea.vmem %s5, %s283
      %p285 = scmp.lt.s32.totalorder %s21, 1
      %s286 = scalar_select %p285, %s21, 1
      %p287 = scmp.lt.s32.totalorder %s22, 0
      %s288 = scalar_select %p287, %s22, 0
      %s289 = sadd.s32 %s288, %s286
      %s290 = smul.addr %s289, 8
      %s291 = scalar_lea.vmem %s6, %s290
      %v292 = vld [vmem:[%s284] sm:$0x7]
      %v293 = vld [vmem:[%s0] sm:$0xff]
      %v294 = vld [vmem:[%s2] sm:$0xff]
      %v295 = vld [vmem:[%s277] sm:$0x1]
      %297 = vset.pattern.permute.xlu0 0
      %298 = vperm.xlu0 %297, %v293
      %v299 = vpop.permute.xlu0 %298
      %v301 = vlaneseq
      %v302 = vshrl.u32 %v301, 7
      %v303 = vsub.s32 0, %v302
      %v304 = vrot.slane %v292, %v303
      %v305 = vmul.f32 %v299, %v304
      %306 = vset.pattern.permute.xlu0 1
      %307 = vperm.xlu0 %306, %v293
      %v308 = vpop.permute.xlu0 %307
      %v310 = vlaneseq
      %v311 = vshrl.u32 %v310, 7
      %v312 = vsub.s32 1, %v311
      %v313 = vrot.slane %v292, %v312
      %v314 = vmul.f32 %v308, %v313
      %v315 = vadd.f32 %v305, %v314
      %316 = vset.pattern.permute.xlu0 2
      %317 = vperm.xlu0 %316, %v293
      %v318 = vpop.permute.xlu0 %317
      %v320 = vlaneseq
      %v321 = vshrl.u32 %v320, 7
      %v322 = vsub.s32 2, %v321
      %v323 = vrot.slane %v292, %v322
      %v324 = vmul.f32 %v318, %v323
      %v325 = vadd.f32 %v315, %v324
      %v326 = vld [vmem:[%s1] sm:$0xff]
      %328 = vset.pattern.permute.xlu0 0
      %329 = vperm.xlu0 %328, %v326
      %v330 = vpop.permute.xlu0 %329
      %v332 = vadd.f32 %v325, %v330
      %v333 = vmax.f32 %v332, 0.0
      %v334 = vmin.f32 %v333, 6.0
      %336 = vset.pattern.permute.xlu0 0
      %337 = vperm.xlu0 %336, %v294
      %v338 = vpop.permute.xlu0 %337
      %v340 = vlaneseq
      %v341 = vshrl.u32 %v340, 7
      %v342 = vsub.s32 0, %v341
      %v343 = vrot.slane %v334, %v342
      %v344 = vmul.f32 %v338, %v343
      %345 = vset.pattern.permute.xlu0 1
      %346 = vperm.xlu0 %345, %v294
      %v347 = vpop.permute.xlu0 %346
      %v349 = vlaneseq
      %v350 = vshrl.u32 %v349, 7
      %v351 = vsub.s32 1, %v350
      %v352 = vrot.slane %v334, %v351
      %v353 = vmul.f32 %v347, %v352
      %v354 = vadd.f32 %v344, %v353
      %355 = vset.pattern.permute.xlu0 2
      %356 = vperm.xlu0 %355, %v294
      %v357 = vpop.permute.xlu0 %356
      %v359 = vlaneseq
      %v360 = vshrl.u32 %v359, 7
      %v361 = vsub.s32 2, %v360
      %v362 = vrot.slane %v334, %v361
      %v363 = vmul.f32 %v357, %v362
      %v364 = vadd.f32 %v354, %v363
      %365 = vset.pattern.permute.xlu0 3
      %366 = vperm.xlu0 %365, %v294
      %v367 = vpop.permute.xlu0 %366
      %v369 = vlaneseq
      %v370 = vshrl.u32 %v369, 7
      %v371 = vsub.s32 3, %v370
      %v372 = vrot.slane %v334, %v371
      %v373 = vmul.f32 %v367, %v372
      %v374 = vadd.f32 %v364, %v373
      %375 = vset.pattern.permute.xlu0 4
      %376 = vperm.xlu0 %375, %v294
      %v377 = vpop.permute.xlu0 %376
      %v379 = vlaneseq
      %v380 = vshrl.u32 %v379, 7
      %v381 = vsub.s32 4, %v380
      %v382 = vrot.slane %v334, %v381
      %v383 = vmul.f32 %v377, %v382
      %v384 = vadd.f32 %v374, %v383
      %385 = vset.pattern.permute.xlu0 5
      %386 = vperm.xlu0 %385, %v294
      %v387 = vpop.permute.xlu0 %386
      %v389 = vlaneseq
      %v390 = vshrl.u32 %v389, 7
      %v391 = vsub.s32 5, %v390
      %v392 = vrot.slane %v334, %v391
      %v393 = vmul.f32 %v387, %v392
      %v394 = vadd.f32 %v384, %v393
      %395 = vset.pattern.permute.xlu0 6
      %396 = vperm.xlu0 %395, %v294
      %v397 = vpop.permute.xlu0 %396
      %v399 = vlaneseq
      %v400 = vshrl.u32 %v399, 7
      %v401 = vsub.s32 6, %v400
      %v402 = vrot.slane %v334, %v401
      %v403 = vmul.f32 %v397, %v402
      %v404 = vadd.f32 %v394, %v403
      %405 = vset.pattern.permute.xlu0 7
      %406 = vperm.xlu0 %405, %v294
      %v407 = vpop.permute.xlu0 %406
      %v409 = vlaneseq
      %v410 = vshrl.u32 %v409, 7
      %v411 = vsub.s32 7, %v410
      %v412 = vrot.slane %v334, %v411
      %v413 = vmul.f32 %v407, %v412
      %v414 = vadd.f32 %v404, %v413
      %v416 = vlaneseq
      %v417 = vshrl.u32 %v416, 7
      %v418 = vsub.s32 0, %v417
      %v419 = vrot.slane %v295, %v418
      %v421 = vmul.f32 %v414, %v419
      %v422 = vld [vmem:[%s3] sm:$0xff]
      %424 = vset.pattern.permute.xlu0 0
      %425 = vperm.xlu0 %424, %v422
      %v426 = vpop.permute.xlu0 %425
      %v428 = vadd.f32 %v421, %v426
      %v429 = vmax.f32 %v428, 0.0
      %v430 = vmin.f32 %v429, 1.0
      %vm431 = vcmask 990208
      %432 = vst.msk [vmem:[%s291] sm:$0xff] %vm431, %v430
      %p433 = scmp.lt.s32.totalorder %s21, 1
      %s434 = scalar_select %p433, %s21, 1
      %p435 = scmp.lt.s32.totalorder %s22, 0
      %s436 = scalar_select %p435, %s22, 0
      %s437 = sadd.s32 %s436, %s434
      %s438 = smul.addr %s437, 8
      %s439 = scalar_lea.vmem %s6, %s438
      // Predicated region
      $region45: #{model_forward.1} parent=43 // pred_check
        %p440 = pneg %p187
      $region46: #{model_forward.1} parent=43 // pred_check_branch
        %442 = sbr.rel (%p440) target = $region48
      $region47: #{model_forward.1} parent=43 // pred_region
        _
      $region48: #{model_forward.1} parent=43 // pred_fallthru
        _
    $region44: #{model_forward.1} parent=5 // pred_fallthru
      _
    %p443 = scmp.le.s32.totalorder 2, %s12
    // Predicated region
    $region49: #{model_forward.1} parent=5 // pred_check
      %p444 = pneg %p443
    $region50: #{model_forward.1} parent=5 // pred_check_branch
      %446 = sbr.rel (%p444) target = $region52
    $region51: #{model_forward.1} parent=5 // pred_region
      %s447 = ssub.s32 %s12, 2
      // Predicated region
      $region53: #{model_forward.1} parent=51 // pred_check
        %p448 = pneg %p193
      $region54: #{model_forward.1} parent=51 // pred_check_branch
        %450 = sbr.rel (%p448) target = $region56
      $region55: #{model_forward.1} parent=51 // pred_region
        %p451 = scmp.lt.s32.totalorder %s23, 1
        %s452 = scalar_select %p451, %s23, 1
        %p453 = scmp.lt.s32.totalorder %s24, 0
        %s454 = scalar_select %p453, %s24, 0
        %s455 = sadd.s32 %s454, %s452
        %s456 = smul.addr %s455, 8
        %s457 = scalar_lea.vmem %s6, %s456
      $region56: #{model_forward.1} parent=51 // pred_fallthru
        _
    $region52: #{model_forward.1} parent=5 // pred_fallthru
      _
  $region6: #{model_forward.1} parent=0 // loop_footer
    %s16 = sadd.s32 1, %s12
  $region7: #{model_forward.1} parent=0 // loop_footer_branch
    %11 = sbr.rel target = $region3
  $region8: #{model_forward.1} parent=0 // loop_exit
    _

</llo_original>
